<compile_context>
chip_gen: v5e
topology: v5e:2x2
jax: 0.10.0
libtpu: 0.0.40
codegen_flags: <defaults>
</compile_context>

<pallas_src>
import functools

import jax
import jax.numpy as jnp
from jax.experimental import pallas as pl
from jax.experimental.pallas import tpu as pltpu


CONV_SHAPES = [(11, 11, 3, 8), (7, 7, 8, 16), (5, 5, 16, 32),
               (5, 5, 32, 32), (5, 5, 32, 64), (3, 3, 64, 64)]
BN_CHANNELS = [3, 8, 16, 32, 32, 64, 64]
POOL_STRIDES = [1, 2, 2, 2, 2, 2]
EPS = 1e-5
TILE = 2048          # flat output columns per matmul/combine tile


# ----------------------------- helpers ------------------------------------- #

def _round_up(x, m):
    return ((x + m - 1) // m) * m


def _sign_f32(y):
    # torch.sign semantics: sign(0) == 0.
    return (y > 0.0).astype(jnp.float32) - (y < 0.0).astype(jnp.float32)


def _bn_fold(gamma, beta, mean, var):
    scale = gamma / jnp.sqrt(var + EPS)
    return scale, beta - mean * scale


# ------------- fused BN + sign + BinConv2d + MaxPool(3, s) kernel ----------- #

def _bn_sign_conv_pool_kernel(x_ref, scale_ref, shift_ref, wt_ref, o_ref,
                              sbin_ref, xcol_ref, conv_ref, rowmax_ref,
                              *, KH, KW, Ci, Co, W, L, K_used, stride, Hp):
    """One image: y = maxpool3(conv2d(sign(bn(x)), sign(w)), stride), row-subsampled.

    x_ref     : (1, Ci, H*W)     f32  channel-major flattened input planes
    scale_ref : (Ci, 1)          f32  gamma / sqrt(var + eps)
    shift_ref : (Ci, 1)          f32  beta - mean * scale
    wt_ref    : (KW*Co, K_pad)   bf16 stacked sign(weight); row g*Co+co, col dh*Ci+ci
    o_ref     : (1, Co, Hp*W)    f32  pooled rows (row subsampled); column subsample
                                      (stride / crop to Wp) is done by the wrapper
    sbin_ref  : (Ci, H*W)        bf16 scratch: sign(bn(x))
    xcol_ref  : (K_pad, L+KW-1)  bf16 scratch: H-unfolded operand
    conv_ref  : (Co, Lc)         f32  scratch: flat conv map (row stride W)
    rowmax_ref: (Co, Rr*W + 2)   f32  scratch: 3-tap row max
    """
    K_pad, Lx = xcol_ref.shape
    _, Lc = conv_ref.shape
    Rr = Hp * stride
    RrW = Rr * W

    # ---- 1) sign(bn(x)) computed once (bf16) ------------------------------- #
    y = x_ref[0] * scale_ref[...] + shift_ref[...]
    sbin_ref[...] = _sign_f32(y).astype(jnp.bfloat16)

    # ---- 2) H-unfold: xcol[dh*Ci+ci, j] = sbin[ci, j + dh*W] ---------------- #
    if K_used < K_pad:
        xcol_ref[K_used:K_pad, :] = jnp.zeros((K_pad - K_used, Lx), jnp.bfloat16)
    if L < Lx:
        xcol_ref[:, L:Lx] = jnp.zeros((K_pad, Lx - L), jnp.bfloat16)
    for dh in range(KH):
        xcol_ref[dh * Ci:(dh + 1) * Ci, 0:L] = sbin_ref[:, pl.ds(dh * W, L)]

    # ---- 3) conv: ONE stacked matmul per tile + in-register tap combine ----- #
    if L < Lc:
        conv_ref[:, L:Lc] = jnp.zeros((Co, Lc - L), jnp.float32)
    for t0 in range(0, L, TILE):
        Tw = min(TILE, L - t0)
        xs = xcol_ref[:, pl.ds(t0, Tw + KW - 1)]                     # (K_pad, Tw+KW-1)
        p = jnp.dot(wt_ref[...], xs,
                    preferred_element_type=jnp.float32)              # (KW*Co, Tw+KW-1)
        acc = p[0:Co, 0:Tw]
        for g in range(1, KW):
            acc = acc + p[g * Co:(g + 1) * Co, g:g + Tw]
        conv_ref[:, pl.ds(t0, Tw)] = acc

    # ---- 4) MaxPool(3, stride): separable max via flat row-stride shifts ---- #
    rowmax_ref[...] = jnp.maximum(
        jnp.maximum(conv_ref[:, pl.ds(0, RrW + 2)],
                    conv_ref[:, pl.ds(W, RrW + 2)]),
        conv_ref[:, pl.ds(2 * W, RrW + 2)])
    t2 = jnp.maximum(
        jnp.maximum(rowmax_ref[:, pl.ds(0, RrW)], rowmax_ref[:, pl.ds(1, RrW)]),
        rowmax_ref[:, pl.ds(2, RrW)])                                # (Co, Rr*W)

    if stride == 1:
        o_ref[0] = t2                                                # Hp == Rr
    else:
        conv_ref[:, 0:RrW] = t2          # reuse conv scratch for the pooled map
        for i in range(Hp):              # row subsample (static offsets, no stride ds)
            o_ref[0, :, pl.ds(i * W, W)] = conv_ref[:, pl.ds(i * stride * W, W)]


def bn_sign_conv_pool(x2, scale, shift, w, *, H, W, stride):
    """x2: (N, Ci, H*W) f32, w: (KH, KW, Ci, Co).
    Returns (pooled_flat (N, Co, Hp*Wp) f32, Hp, Wp)."""
    N, Ci, HWin = x2.shape
    KH, KW, Ci2, Co = w.shape
    assert Ci2 == Ci and HWin == H * W
    Hc, Wc = H - KH + 1, W - KW + 1
    Hp, Wp = (Hc - 3) // stride + 1, (Wc - 3) // stride + 1
    L = Hc * W
    RrW = Hp * stride * W
    K_used = KH * Ci
    K_pad = _round_up(K_used, 16)        # bf16 sublane packing
    Lx = L + KW - 1
    Lc = max(L, RrW + 2 * W + 2)

    # Binarize + stack weights once (tiny): wt[g*Co+co, dh*Ci+ci] = sign(w)[dh,g,ci,co]
    wt = jnp.transpose(jnp.sign(w), (1, 3, 0, 2)).reshape(KW * Co, K_used)
    wt = jnp.pad(wt, ((0, 0), (0, K_pad - K_used))).astype(jnp.bfloat16)

    kernel = functools.partial(_bn_sign_conv_pool_kernel, KH=KH, KW=KW, Ci=Ci, Co=Co,
                               W=W, L=L, K_used=K_used, stride=stride, Hp=Hp)
    out = pl.pallas_call(
        kernel,
        out_shape=jax.ShapeDtypeStruct((N, Co, Hp * W), jnp.float32),
        grid=(N,),
        in_specs=[
            pl.BlockSpec((1, Ci, HWin), lambda n: (n, 0, 0)),
            pl.BlockSpec((Ci, 1), lambda n: (0, 0)),
            pl.BlockSpec((Ci, 1), lambda n: (0, 0)),
            pl.BlockSpec((KW * Co, K_pad), lambda n: (0, 0)),
        ],
        out_specs=pl.BlockSpec((1, Co, Hp * W), lambda n: (n, 0, 0)),
        scratch_shapes=[
            pltpu.VMEM((Ci, HWin), jnp.bfloat16),      # sign(bn(x))
            pltpu.VMEM((K_pad, Lx), jnp.bfloat16),     # H-unfolded operand
            pltpu.VMEM((Co, Lc), jnp.float32),         # flat conv map
            pltpu.VMEM((Co, RrW + 2), jnp.float32),    # 3-tap row max
        ],
        compiler_params=pltpu.CompilerParams(
            dimension_semantics=("parallel",),
            vmem_limit_bytes=48 * 1024 * 1024),
    )(x2, scale.reshape(Ci, 1).astype(jnp.float32),
      shift.reshape(Ci, 1).astype(jnp.float32), wt)

    # Column subsample / crop: cheap XLA strided slice on the already-pooled rows.
    out4 = out.reshape(N, Co, Hp, W)
    out4 = out4[:, :, :, 0:(Wp - 1) * stride + 1:stride]             # (N, Co, Hp, Wp)
    return out4.reshape(N, Co, Hp * Wp), Hp, Wp


# ---------------- fused final BN + sign + Flatten + BinaryLinear ------------- #

def _bn_sign_linear_kernel(x_ref, scale_ref, shift_ref, w_ref, o_ref):
    y = x_ref[...] * scale_ref[...] + shift_ref[...]
    s = _sign_f32(y).astype(jnp.bfloat16)
    o_ref[...] = jnp.dot(s, w_ref[...], preferred_element_type=jnp.float32)


def bn_sign_linear(x, scale, shift, w):
    """x: (N, F) f32; scale/shift: (F,); w: (F, n_cls).  out = sign(bn(x)) @ sign(w)."""
    N, F = x.shape
    n_cls = w.shape[1]
    return pl.pallas_call(
        _bn_sign_linear_kernel,
        out_shape=jax.ShapeDtypeStruct((N, n_cls), jnp.float32),
    )(x, scale.reshape(1, F).astype(jnp.float32),
      shift.reshape(1, F).astype(jnp.float32),
      jnp.sign(w).astype(jnp.bfloat16))


# ------------------------------ model -------------------------------------- #

def init_params(key, class_count):
    keys = jax.random.split(key, 64)
    ki = 0
    convs = []
    for s in CONV_SHAPES:
        convs.append(0.1 * jax.random.normal(keys[ki], s, jnp.float32)); ki += 1
    bns = []
    for c in BN_CHANNELS:
        gamma = 1.0 + 0.1 * jax.random.normal(keys[ki], (c,), jnp.float32); ki += 1
        beta = 0.1 * jax.random.normal(keys[ki], (c,), jnp.float32); ki += 1
        mean = 0.1 * jax.random.normal(keys[ki], (c,), jnp.float32); ki += 1
        var = 1.0 + 0.1 * jax.random.uniform(keys[ki], (c,), jnp.float32); ki += 1
        bns.append((gamma, beta, mean, var))
    # BinaryLinear(in_features=256, out_features=class_count), stored as (256, classCount).
    w_lin = 0.1 * jax.random.normal(keys[ki], (256, class_count), jnp.float32)
    return convs, bns, w_lin


def bin_spec_cnn_forward(x_nchw, convs, bns, w_lin):
    N, C, H, W = x_nchw.shape
    x2 = x_nchw.reshape(N, C, H * W).astype(jnp.float32)          # channel-major planes
    for i in range(6):
        scale, shift = _bn_fold(*bns[i])
        x2, H, W = bn_sign_conv_pool(x2, scale, shift, convs[i], H=H, W=W,
                                     stride=POOL_STRIDES[i])      # (N, Co, Hp*Wp)
        C = CONV_SHAPES[i][3]
    # Final BatchNorm + BinActivation + Flatten ((C, H, W) order) + BinaryLinear.
    scale, shift = _bn_fold(*bns[6])
    feat = x2.reshape(N, C * H * W)                               # (N, 256)
    return bn_sign_linear(feat, jnp.repeat(scale, H * W), jnp.repeat(shift, H * W), w_lin)


# ------------------------------ self-test ----------------------------------- #

def _ref_layer(x4, scale, shift, w, stride):
    """Pure-JAX reference: BN(eval) -> sign -> conv(valid, sign(w)) -> maxpool(3, s)."""
    sc = scale.reshape(1, -1, 1, 1)
    sh = shift.reshape(1, -1, 1, 1)
    xs = _sign_f32(x4 * sc + sh)
    y = jax.lax.conv_general_dilated(
        xs, jnp.transpose(jnp.sign(w), (3, 2, 0, 1)), window_strides=(1, 1),
        padding="VALID", dimension_numbers=("NCHW", "OIHW", "NCHW"))
    return jax.lax.reduce_window(y, -jnp.inf, jax.lax.max,
                                 (1, 1, 3, 3), (1, 1, stride, stride), "VALID")


def _self_test():
    """Exact (integer-arithmetic) checks of the fused conv+pool kernel at small shapes."""
    key = jax.random.PRNGKey(1)
    for (Ci, Co, H, W, KH, KW, stride) in [(3, 8, 20, 23, 5, 5, 1),
                                           (8, 16, 21, 19, 3, 3, 2)]:
        k1, k2, k3, k4, key = jax.random.split(key, 5)
        x4 = jax.random.normal(k1, (2, Ci, H, W), jnp.float32)
        w = jax.random.normal(k2, (KH, KW, Ci, Co), jnp.float32)
        scale = 1.0 + 0.1 * jax.random.normal(k3, (Ci,), jnp.float32)
        shift = 0.1 * jax.random.normal(k4, (Ci,), jnp.float32)

        got, Hp, Wp = bn_sign_conv_pool(x4.reshape(2, Ci, H * W), scale, shift, w,
                                        H=H, W=W, stride=stride)
        ref = _ref_layer(x4, scale, shift, w, stride)
        assert ref.shape == (2, Co, Hp, Wp), (ref.shape, Hp, Wp)
        diff = float(jnp.max(jnp.abs(got.reshape(ref.shape) - ref)))
        assert diff == 0.0, f"fused conv+pool kernel mismatch (stride={stride}): {diff}"


# ------------------------------- main --------------------------------------- #

if __name__ == "__main__":
    class_count = 10
    k_params, k_x = jax.random.split(jax.random.PRNGKey(0))
    convs, bns, w_lin = init_params(k_params, class_count)

    # Smallest input consistent with the architecture: Linear(in_features=256)
    # requires a final 64 x 2 x 2 feature map, which implies 201 x 201 spatial input.
    x = jax.random.normal(k_x, (2, 3, 201, 201), jnp.float32)

    _self_test()

    fwd = jax.jit(bin_spec_cnn_forward)
    out = jax.block_until_ready(fwd(x, convs, bns, w_lin))

    assert out.shape == (2, class_count), out.shape
    assert bool(jnp.all(jnp.isfinite(out)))
    print("KERNEL_OK")
</pallas_src>

<mosaic_0001>
module attributes {stable_mosaic.version = 11 : i64} {
  func.func @_bn_sign_conv_pool_kernel(%arg0: i32, %arg1: memref<1x3x460xf32, #tpu.memory_space<vmem>>, %arg2: memref<3x1xf32, #tpu.memory_space<vmem>>, %arg3: memref<3x1xf32, #tpu.memory_space<vmem>>, %arg4: memref<40x16xbf16, #tpu.memory_space<vmem>>, %arg5: memref<1x8x322xf32, #tpu.memory_space<vmem>>, %arg6: memref<3x460xbf16, #tpu.memory_space<vmem>>, %arg7: memref<16x372xbf16, #tpu.memory_space<vmem>>, %arg8: memref<8x370xf32, #tpu.memory_space<vmem>>, %arg9: memref<8x324xf32, #tpu.memory_space<vmem>>) attributes {dimension_semantics = [#tpu.dimension_semantics<parallel>], iteration_bounds = array<i64: 2>, scalar_prefetch = 0 : i64, scratch_operands = 4 : i64, tpu.core_type = #tpu.core_type<tc>, window_params = [{transform_indices = @transform_0, window_bounds = array<i64: 1, 3, 460>}, {pipeline_mode = #tpu.pipeline_mode<synchronous>, transform_indices = @transform_1, window_bounds = array<i64: 3, 1>}, {pipeline_mode = #tpu.pipeline_mode<synchronous>, transform_indices = @transform_2, window_bounds = array<i64: 3, 1>}, {pipeline_mode = #tpu.pipeline_mode<synchronous>, transform_indices = @transform_3, window_bounds = array<i64: 40, 16>}, {transform_indices = @transform_4, window_bounds = array<i64: 1, 8, 322>}]} {
    %c0 = arith.constant 0 : index
    %c0_0 = arith.constant 0 : index
    %c0_1 = arith.constant 0 : index
    %0 = vector.load %arg1[%c0, %c0_0, %c0_1] : memref<1x3x460xf32, #tpu.memory_space<vmem>>, vector<1x3x460xf32>
    %1 = vector.shape_cast %0 : vector<1x3x460xf32> to vector<3x460xf32>
    %c0_2 = arith.constant 0 : index
    %c0_3 = arith.constant 0 : index
    %2 = vector.load %arg2[%c0_2, %c0_3] : memref<3x1xf32, #tpu.memory_space<vmem>>, vector<3x1xf32>
    %3 = vector.broadcast %2 : vector<3x1xf32> to vector<3x460xf32>
    %4 = arith.mulf %1, %3 : vector<3x460xf32>
    %c0_4 = arith.constant 0 : index
    %c0_5 = arith.constant 0 : index
    %5 = vector.load %arg3[%c0_4, %c0_5] : memref<3x1xf32, #tpu.memory_space<vmem>>, vector<3x1xf32>
    %6 = vector.broadcast %5 : vector<3x1xf32> to vector<3x460xf32>
    %7 = arith.addf %4, %6 : vector<3x460xf32>
    %cst = arith.constant 0.000000e+00 : f32
    %8 = vector.broadcast %cst : f32 to vector<3x460xf32>
    %9 = arith.cmpf ogt, %7, %8 : vector<3x460xf32>
    %10 = arith.extui %9 : vector<3x460xi1> to vector<3x460xi32>
    %11 = arith.sitofp %10 : vector<3x460xi32> to vector<3x460xf32>
    %cst_6 = arith.constant 0.000000e+00 : f32
    %12 = vector.broadcast %cst_6 : f32 to vector<3x460xf32>
    %13 = arith.cmpf olt, %7, %12 : vector<3x460xf32>
    %14 = arith.extui %13 : vector<3x460xi1> to vector<3x460xi32>
    %15 = arith.sitofp %14 : vector<3x460xi32> to vector<3x460xf32>
    %16 = arith.subf %11, %15 : vector<3x460xf32>
    %17 = arith.truncf %16 : vector<3x460xf32> to vector<3x460xbf16>
    %c0_7 = arith.constant 0 : index
    %c0_8 = arith.constant 0 : index
    %18 = vector.load %arg6[%c0_7, %c0_8] : memref<3x460xbf16, #tpu.memory_space<vmem>>, vector<3x460xbf16>
    tpu.vector_store %arg6[%c0_7, %c0_8], %17 {strides = array<i32>} : memref<3x460xbf16, #tpu.memory_space<vmem>>, vector<3x460xbf16>,
    %cst_9 = arith.constant 0.000000e+00 : bf16
    %19 = vector.broadcast %cst_9 : bf16 to vector<1x372xbf16>
    %c15 = arith.constant 15 : index
    %c0_10 = arith.constant 0 : index
    %20 = vector.load %arg7[%c15, %c0_10] : memref<16x372xbf16, #tpu.memory_space<vmem>>, vector<1x372xbf16>
    tpu.vector_store %arg7[%c15, %c0_10], %19 {strides = array<i32>} : memref<16x372xbf16, #tpu.memory_space<vmem>>, vector<1x372xbf16>,
    %cst_11 = arith.constant 0.000000e+00 : bf16
    %21 = vector.broadcast %cst_11 : bf16 to vector<16x4xbf16>
    %c0_12 = arith.constant 0 : index
    %c368 = arith.constant 368 : index
    %22 = vector.load %arg7[%c0_12, %c368] : memref<16x372xbf16, #tpu.memory_space<vmem>>, vector<16x4xbf16>
    tpu.vector_store %arg7[%c0_12, %c368], %21 {strides = array<i32>} : memref<16x372xbf16, #tpu.memory_space<vmem>>, vector<16x4xbf16>,
    %c0_13 = arith.constant 0 : index
    %c0_14 = arith.constant 0 : index
    %23 = vector.load %arg6[%c0_13, %c0_14] : memref<3x460xbf16, #tpu.memory_space<vmem>>, vector<3x368xbf16>
    %c0_15 = arith.constant 0 : index
    %c0_16 = arith.constant 0 : index
    %24 = vector.load %arg7[%c0_15, %c0_16] : memref<16x372xbf16, #tpu.memory_space<vmem>>, vector<3x368xbf16>
    tpu.vector_store %arg7[%c0_15, %c0_16], %23 {strides = array<i32>} : memref<16x372xbf16, #tpu.memory_space<vmem>>, vector<3x368xbf16>,
    %c0_17 = arith.constant 0 : index
    %c23 = arith.constant 23 : index
    %25 = vector.load %arg6[%c0_17, %c23] : memref<3x460xbf16, #tpu.memory_space<vmem>>, vector<3x368xbf16>
    %c3 = arith.constant 3 : index
    %c0_18 = arith.constant 0 : index
    %26 = vector.load %arg7[%c3, %c0_18] : memref<16x372xbf16, #tpu.memory_space<vmem>>, vector<3x368xbf16>
    tpu.vector_store %arg7[%c3, %c0_18], %25 {strides = array<i32>} : memref<16x372xbf16, #tpu.memory_space<vmem>>, vector<3x368xbf16>,
    %c0_19 = arith.constant 0 : index
    %c46 = arith.constant 46 : index
    %27 = vector.load %arg6[%c0_19, %c46] : memref<3x460xbf16, #tpu.memory_space<vmem>>, vector<3x368xbf16>
    %c6 = arith.constant 6 : index
    %c0_20 = arith.constant 0 : index
    %28 = vector.load %arg7[%c6, %c0_20] : memref<16x372xbf16, #tpu.memory_space<vmem>>, vector<3x368xbf16>
    tpu.vector_store %arg7[%c6, %c0_20], %27 {strides = array<i32>} : memref<16x372xbf16, #tpu.memory_space<vmem>>, vector<3x368xbf16>,
    %c0_21 = arith.constant 0 : index
    %c69 = arith.constant 69 : index
    %29 = vector.load %arg6[%c0_21, %c69] : memref<3x460xbf16, #tpu.memory_space<vmem>>, vector<3x368xbf16>
    %c9 = arith.constant 9 : index
    %c0_22 = arith.constant 0 : index
    %30 = vector.load %arg7[%c9, %c0_22] : memref<16x372xbf16, #tpu.memory_space<vmem>>, vector<3x368xbf16>
    tpu.vector_store %arg7[%c9, %c0_22], %29 {strides = array<i32>} : memref<16x372xbf16, #tpu.memory_space<vmem>>, vector<3x368xbf16>,
    %c0_23 = arith.constant 0 : index
    %c92 = arith.constant 92 : index
    %31 = vector.load %arg6[%c0_23, %c92] : memref<3x460xbf16, #tpu.memory_space<vmem>>, vector<3x368xbf16>
    %c12 = arith.constant 12 : index
    %c0_24 = arith.constant 0 : index
    %32 = vector.load %arg7[%c12, %c0_24] : memref<16x372xbf16, #tpu.memory_space<vmem>>, vector<3x368xbf16>
    tpu.vector_store %arg7[%c12, %c0_24], %31 {strides = array<i32>} : memref<16x372xbf16, #tpu.memory_space<vmem>>, vector<3x368xbf16>,
    %cst_25 = arith.constant 0.000000e+00 : f32
    %33 = vector.broadcast %cst_25 : f32 to vector<8x2xf32>
    %c0_26 = arith.constant 0 : index
    %c368_27 = arith.constant 368 : index
    %34 = vector.load %arg8[%c0_26, %c368_27] : memref<8x370xf32, #tpu.memory_space<vmem>>, vector<8x2xf32>
    tpu.vector_store %arg8[%c0_26, %c368_27], %33 {strides = array<i32>} : memref<8x370xf32, #tpu.memory_space<vmem>>, vector<8x2xf32>,
    %c0_28 = arith.constant 0 : index
    %c0_29 = arith.constant 0 : index
    %35 = vector.load %arg7[%c0_28, %c0_29] : memref<16x372xbf16, #tpu.memory_space<vmem>>, vector<16x372xbf16>
    %c0_30 = arith.constant 0 : index
    %c0_31 = arith.constant 0 : index
    %36 = vector.load %arg4[%c0_30, %c0_31] : memref<40x16xbf16, #tpu.memory_space<vmem>>, vector<40x16xbf16>
    %cst_32 = arith.constant dense<0.000000e+00> : vector<40x372xf32>
    %37 = tpu.matmul %36, %35, %cst_32 {dimension_numbers = #tpu.dot_dimension_numbers<[1], [0], [0], [1], [0, 0, 1, 1], [], []>} : vector<40x16xbf16>, vector<16x372xbf16>, vector<40x372xf32> -> vector<40x372xf32>
    %38 = vector.extract_strided_slice %37 {offsets = [0, 0], sizes = [8, 368], strides = [1, 1]} : vector<40x372xf32> to vector<8x368xf32>
    %39 = vector.extract_strided_slice %37 {offsets = [8, 1], sizes = [8, 368], strides = [1, 1]} : vector<40x372xf32> to vector<8x368xf32>
    %40 = arith.addf %38, %39 : vector<8x368xf32>
    %41 = vector.extract_strided_slice %37 {offsets = [16, 2], sizes = [8, 368], strides = [1, 1]} : vector<40x372xf32> to vector<8x368xf32>
    %42 = arith.addf %40, %41 : vector<8x368xf32>
    %43 = vector.extract_strided_slice %37 {offsets = [24, 3], sizes = [8, 368], strides = [1, 1]} : vector<40x372xf32> to vector<8x368xf32>
    %44 = arith.addf %42, %43 : vector<8x368xf32>
    %45 = vector.extract_strided_slice %37 {offsets = [32, 4], sizes = [8, 368], strides = [1, 1]} : vector<40x372xf32> to vector<8x368xf32>
    %46 = arith.addf %44, %45 : vector<8x368xf32>
    %c0_33 = arith.constant 0 : index
    %c0_34 = arith.constant 0 : index
    %47 = vector.load %arg8[%c0_33, %c0_34] : memref<8x370xf32, #tpu.memory_space<vmem>>, vector<8x368xf32>
    tpu.vector_store %arg8[%c0_33, %c0_34], %46 {strides = array<i32>} : memref<8x370xf32, #tpu.memory_space<vmem>>, vector<8x368xf32>,
    %c0_35 = arith.constant 0 : index
    %c0_36 = arith.constant 0 : index
    %48 = vector.load %arg8[%c0_35, %c0_36] : memref<8x370xf32, #tpu.memory_space<vmem>>, vector<8x324xf32>
    %c0_37 = arith.constant 0 : index
    %c23_38 = arith.constant 23 : index
    %49 = vector.load %arg8[%c0_37, %c23_38] : memref<8x370xf32, #tpu.memory_space<vmem>>, vector<8x324xf32>
    %50 = arith.maximumf %48, %49 : vector<8x324xf32>
    %c0_39 = arith.constant 0 : index
    %c46_40 = arith.constant 46 : index
    %51 = vector.load %arg8[%c0_39, %c46_40] : memref<8x370xf32, #tpu.memory_space<vmem>>, vector<8x324xf32>
    %52 = arith.maximumf %50, %51 : vector<8x324xf32>
    %c0_41 = arith.constant 0 : index
    %c0_42 = arith.constant 0 : index
    %53 = vector.load %arg9[%c0_41, %c0_42] : memref<8x324xf32, #tpu.memory_space<vmem>>, vector<8x324xf32>
    tpu.vector_store %arg9[%c0_41, %c0_42], %52 {strides = array<i32>} : memref<8x324xf32, #tpu.memory_space<vmem>>, vector<8x324xf32>,
    %c0_43 = arith.constant 0 : index
    %c0_44 = arith.constant 0 : index
    %54 = vector.load %arg9[%c0_43, %c0_44] : memref<8x324xf32, #tpu.memory_space<vmem>>, vector<8x322xf32>
    %c0_45 = arith.constant 0 : index
    %c1 = arith.constant 1 : index
    %55 = vector.load %arg9[%c0_45, %c1] : memref<8x324xf32, #tpu.memory_space<vmem>>, vector<8x322xf32>
    %56 = arith.maximumf %54, %55 : vector<8x322xf32>
    %c0_46 = arith.constant 0 : index
    %c2 = arith.constant 2 : index
    %57 = vector.load %arg9[%c0_46, %c2] : memref<8x324xf32, #tpu.memory_space<vmem>>, vector<8x322xf32>
    %58 = arith.maximumf %56, %57 : vector<8x322xf32>
    %c0_47 = arith.constant 0 : index
    %c0_48 = arith.constant 0 : index
    %c0_49 = arith.constant 0 : index
    %59 = vector.load %arg5[%c0_47, %c0_48, %c0_49] : memref<1x8x322xf32, #tpu.memory_space<vmem>>, vector<1x8x322xf32>
    %60 = vector.shape_cast %59 : vector<1x8x322xf32> to vector<8x322xf32>
    %61 = vector.shape_cast %58 : vector<8x322xf32> to vector<1x8x322xf32>
    tpu.vector_store %arg5[%c0_47, %c0_48, %c0_49], %61 {strides = array<i32>} : memref<1x8x322xf32, #tpu.memory_space<vmem>>, vector<1x8x322xf32>,
    return
  }
  func.func @transform_0(%arg0: i32) -> (i32, i32, i32) {
    %c0_i32 = arith.constant 0 : i32
    %c0_i32_0 = arith.constant 0 : i32
    %c0_i32_1 = arith.constant 0 : i32
    return %arg0, %c0_i32, %c0_i32_0 : i32, i32, i32
  }
  func.func @transform_1(%arg0: i32) -> (i32, i32) {
    %c0_i32 = arith.constant 0 : i32
    %c0_i32_0 = arith.constant 0 : i32
    %c0_i32_1 = arith.constant 0 : i32
    return %c0_i32, %c0_i32_0 : i32, i32
  }
  func.func @transform_2(%arg0: i32) -> (i32, i32) {
    %c0_i32 = arith.constant 0 : i32
    %c0_i32_0 = arith.constant 0 : i32
    %c0_i32_1 = arith.constant 0 : i32
    return %c0_i32, %c0_i32_0 : i32, i32
  }
  func.func @transform_3(%arg0: i32) -> (i32, i32) {
    %c0_i32 = arith.constant 0 : i32
    %c0_i32_0 = arith.constant 0 : i32
    %c0_i32_1 = arith.constant 0 : i32
    return %c0_i32, %c0_i32_0 : i32, i32
  }
  func.func @transform_4(%arg0: i32) -> (i32, i32, i32) {
    %c0_i32 = arith.constant 0 : i32
    %c0_i32_0 = arith.constant 0 : i32
    %c0_i32_1 = arith.constant 0 : i32
    return %arg0, %c0_i32, %c0_i32_0 : i32, i32, i32
  }
}

</mosaic_0001>

<llo_original>
// kernel: tpu_custom_call.1
$region0: #{tpu_custom_call.1}
  #allocation0 [shape = 'u32[]', space=smem, size = 0x4, offset = 0x4, fixed_abs, tag = 'smem constant byte address 0x4 - core index']
  #allocation1 [shape = 'u32[72,128]{1,0:T(1,128)}', space=vmem, size = 0x9000, scoped, tag = 'internal scratch']
  #allocation2 [shape = 'bf16[3,460]{1,0:T(4,128)(2,1)}', space=vmem, size = 0x1000, scoped, tag = 'scratch operand']
  #allocation3 [shape = 'bf16[16,372]{1,0:T(8,128)(2,1)}', space=vmem, size = 0x3000, scoped, tag = 'scratch operand']
  #allocation4 [shape = 'f32[8,370]{1,0:T(8,128)}', space=vmem, size = 0x3000, scoped, tag = 'scratch operand']
  #allocation5 [shape = 'f32[8,324]{1,0:T(8,128)}', space=vmem, size = 0x3000, scoped, tag = 'scratch operand']
  %s0 = inlined_call_operand.vmem [shape: f32[2,3,460], index: 0, kind: input, shape index: {}]
  %s1 = inlined_call_operand.vmem [shape: f32[3,1], index: 1, kind: input, shape index: {}]
  %s2 = inlined_call_operand.vmem [shape: f32[3,1], index: 2, kind: input, shape index: {}]
  %s3 = inlined_call_operand.vmem [shape: bf16[40,16], index: 3, kind: input, shape index: {}]
  %s4 = inlined_call_operand.hbm [shape: f32[2,8,322], index: 4, kind: output, shape index: {}]
  %s5 = sld [smem:[#allocation0]]
  $region49: #{tpu_custom_call.1} parent=0
    _
  %s7 = ssub.s32 1, %s5
  %s8 = scalar_select 0, %s7, %s5
  $region1: #{tpu_custom_call.1} parent=0
    #allocation6 [shape = 'u8[24576]{0}', space=vmem, size = 0x6000, scoped, tag = 'output window, operand 0']
    #allocation7 [shape = 's32[2]{0}', space=sflag, size = 0x8, scoped, tag = 'scoped memory for tpu_custom_call.1']
    %9 = vsyncpa [#allocation7], 0
    %s10 = scalar_lea.sflag [#allocation7], 1
    %11 = vsyncpa %s10, 0
    loop: start=0, step=1, limit=4
    $region2: #{tpu_custom_call.1} parent=1 // loop_pre_header
      _
    $region3: #{tpu_custom_call.1} parent=1 // loop_header
      %s13 = sphi 0, %s17
      %p14 = scmp.ge.s32.totalorder %s13, 4
      %s23 = sphi 0, %s25
      %s26 = sphi 0, %s23
      %s27 = sphi 0, %s26
      %s43 = sphi 0, %s27
      %s47 = sphi 0, %s47
      %s49 = sphi 0, %s47
      %s50 = sphi 0, %s49
      %s64 = sphi 0, %s50
      %s68 = sphi 0, %s68
      %s70 = sphi 0, %s68
      %s71 = sphi 0, %s70
      %s85 = sphi 0, %s71
      %s89 = sphi 0, %s89
      %s91 = sphi 0, %s89
      %s92 = sphi 0, %s91
      %s106 = sphi 0, %s92
      %s112 = sphi 0, %s114
      %s115 = sphi 0, %s112
      %s116 = sphi 0, %s115
      %s132 = sphi 0, %s116
    $region4: #{tpu_custom_call.1} parent=1 // loop_header_branch
      %16 = sbr.rel (%p14) target = $region8
    $region5: #{tpu_custom_call.1} parent=1 // loop_body
      %s18 = ssub.s32 %s13, 1
      %s19 = ssub.s32 %s13, 2
      %s20 = sadd.s32 %s13, 1
      %s21 = ssub.s32 %s13, %s20
      %p22 = scmp.eq.s32.totalorder %s21, 0
      %s24 = sadd.s32 %s23, 1
      %s25 = scalar_select %p22, %s23, %s24
      %p28 = pneg %p22
      %p29 = scmp.eq.s32.totalorder %s13, 1
      %p30 = por %p28, %p29
      %p31 = scmp.ne.s32.totalorder %s23, %s26
      %p32 = scmp.eq.s32.totalorder %s13, 0
      %p33 = por %p31, %p32
      %p34 = scmp.ne.s32.totalorder %s23, %s26
      %p35 = scmp.eq.s32.totalorder %s18, 1
      %p36 = por %p34, %p35
      %p37 = scmp.ne.s32.totalorder %s26, %s27
      %p38 = scmp.eq.s32.totalorder %s18, 0
      %p39 = por %p37, %p38
      %p40 = scmp.ne.s32.totalorder %s26, %s27
      %p41 = scmp.eq.s32.totalorder %s19, 1
      %p42 = por %p40, %p41
      %p44 = scmp.ne.s32.totalorder %s27, %s43
      %p45 = scmp.eq.s32.totalorder %s19, 0
      %p46 = por %p44, %p45
      %s48 = sadd.s32 %s47, 1
      %p51 = scmp.eq.s32.totalorder %s13, 1
      %p52 = scmp.ne.s32.totalorder %s47, %s49
      %p53 = scmp.eq.s32.totalorder %s13, 0
      %p54 = por %p52, %p53
      %p55 = scmp.ne.s32.totalorder %s47, %s49
      %p56 = scmp.eq.s32.totalorder %s18, 1
      %p57 = por %p55, %p56
      %p58 = scmp.ne.s32.totalorder %s49, %s50
      %p59 = scmp.eq.s32.totalorder %s18, 0
      %p60 = por %p58, %p59
      %p61 = scmp.ne.s32.totalorder %s49, %s50
      %p62 = scmp.eq.s32.totalorder %s19, 1
      %p63 = por %p61, %p62
      %p65 = scmp.ne.s32.totalorder %s50, %s64
      %p66 = scmp.eq.s32.totalorder %s19, 0
      %p67 = por %p65, %p66
      %s69 = sadd.s32 %s68, 1
      %p72 = scmp.eq.s32.totalorder %s13, 1
      %p73 = scmp.ne.s32.totalorder %s68, %s70
      %p74 = scmp.eq.s32.totalorder %s13, 0
      %p75 = por %p73, %p74
      %p76 = scmp.ne.s32.totalorder %s68, %s70
      %p77 = scmp.eq.s32.totalorder %s18, 1
      %p78 = por %p76, %p77
      %p79 = scmp.ne.s32.totalorder %s70, %s71
      %p80 = scmp.eq.s32.totalorder %s18, 0
      %p81 = por %p79, %p80
      %p82 = scmp.ne.s32.totalorder %s70, %s71
      %p83 = scmp.eq.s32.totalorder %s19, 1
      %p84 = por %p82, %p83
      %p86 = scmp.ne.s32.totalorder %s71, %s85
      %p87 = scmp.eq.s32.totalorder %s19, 0
      %p88 = por %p86, %p87
      %s90 = sadd.s32 %s89, 1
      %p93 = scmp.eq.s32.totalorder %s13, 1
      %p94 = scmp.ne.s32.totalorder %s89, %s91
      %p95 = scmp.eq.s32.totalorder %s13, 0
      %p96 = por %p94, %p95
      %p97 = scmp.ne.s32.totalorder %s89, %s91
      %p98 = scmp.eq.s32.totalorder %s18, 1
      %p99 = por %p97, %p98
      %p100 = scmp.ne.s32.totalorder %s91, %s92
      %p101 = scmp.eq.s32.totalorder %s18, 0
      %p102 = por %p100, %p101
      %p103 = scmp.ne.s32.totalorder %s91, %s92
      %p104 = scmp.eq.s32.totalorder %s19, 1
      %p105 = por %p103, %p104
      %p107 = scmp.ne.s32.totalorder %s92, %s106
      %p108 = scmp.eq.s32.totalorder %s19, 0
      %p109 = por %p107, %p108
      %s110 = ssub.s32 %s13, %s20
      %p111 = scmp.eq.s32.totalorder %s110, 0
      %s113 = sadd.s32 %s112, 1
      %s114 = scalar_select %p111, %s112, %s113
      %p117 = pneg %p111
      %p118 = scmp.eq.s32.totalorder %s13, 1
      %p119 = por %p117, %p118
      %p120 = scmp.ne.s32.totalorder %s112, %s115
      %p121 = scmp.eq.s32.totalorder %s13, 0
      %p122 = por %p120, %p121
      %p123 = scmp.ne.s32.totalorder %s112, %s115
      %p124 = scmp.eq.s32.totalorder %s18, 1
      %p125 = por %p123, %p124
      %p126 = scmp.ne.s32.totalorder %s115, %s116
      %p127 = scmp.eq.s32.totalorder %s18, 0
      %p128 = por %p126, %p127
      %p129 = scmp.ne.s32.totalorder %s115, %s116
      %p130 = scmp.eq.s32.totalorder %s19, 1
      %p131 = por %p129, %p130
      %p133 = scmp.ne.s32.totalorder %s116, %s132
      %p134 = scmp.eq.s32.totalorder %s19, 0
      %p135 = por %p133, %p134
      %p136 = scmp.le.s32.totalorder 1, %s13
      %p137 = scmp.lt.s32.totalorder %s13, 3
      %p138 = pnand %p136, %p137
      %p139 = pneg %p138
      // Predicated region
      $region9: #{tpu_custom_call.1} parent=5 // pred_check
        _
      $region10: #{tpu_custom_call.1} parent=5 // pred_check_branch
        %141 = sbr.rel (%p138) target = $region12
      $region11: #{tpu_custom_call.1} parent=5 // pred_region
        %s142 = ssub.s32 %s13, 1
        // Predicated region
        $region13: #{tpu_custom_call.1} parent=11 // pred_check
          %p143 = pneg %p60
        $region14: #{tpu_custom_call.1} parent=11 // pred_check_branch
          %145 = sbr.rel (%p143) target = $region16
        $region15: #{tpu_custom_call.1} parent=11 // pred_region
          _
        $region16: #{tpu_custom_call.1} parent=11 // pred_fallthru
          _
        // Predicated region
        $region17: #{tpu_custom_call.1} parent=11 // pred_check
          %p146 = pneg %p81
        $region18: #{tpu_custom_call.1} parent=11 // pred_check_branch
          %148 = sbr.rel (%p146) target = $region20
        $region19: #{tpu_custom_call.1} parent=11 // pred_region
          _
        $region20: #{tpu_custom_call.1} parent=11 // pred_fallthru
          _
        // Predicated region
        $region21: #{tpu_custom_call.1} parent=11 // pred_check
          %p149 = pneg %p102
        $region22: #{tpu_custom_call.1} parent=11 // pred_check_branch
          %151 = sbr.rel (%p149) target = $region24
        $region23: #{tpu_custom_call.1} parent=11 // pred_region
          _
        $region24: #{tpu_custom_call.1} parent=11 // pred_fallthru
          _
      $region12: #{tpu_custom_call.1} parent=5 // pred_fallthru
        _
      %p152 = scmp.lt.s32.totalorder %s13, 2
      // Predicated region
      $region25: #{tpu_custom_call.1} parent=5 // pred_check
        %p153 = pneg %p152
      $region26: #{tpu_custom_call.1} parent=5 // pred_check_branch
        %155 = sbr.rel (%p153) target = $region28
      $region27: #{tpu_custom_call.1} parent=5 // pred_region
        // Predicated region
        $region29: #{tpu_custom_call.1} parent=27 // pred_check
          %p156 = pneg %p33
        $region30: #{tpu_custom_call.1} parent=27 // pred_check_branch
          %158 = sbr.rel (%p156) target = $region32
        $region31: #{tpu_custom_call.1} parent=27 // pred_region
          %p159 = scmp.lt.s32.totalorder %s13, 1
          %s160 = scalar_select %p159, %s13, 1
          %s161 = smul.addr %s160, 4
          %s162 = smul.addr %s161, 4
          %s163 = scalar_lea.vmem %s0, %s162
        $region32: #{tpu_custom_call.1} parent=27 // pred_fallthru
          _
      $region28: #{tpu_custom_call.1} parent=5 // pred_fallthru
        _
      %p164 = scmp.le.s32.totalorder 1, %s13
      %p165 = scmp.lt.s32.totalorder %s13, 3
      %p166 = pnand %p164, %p165
      %p167 = pneg %p166
      // Predicated region
      $region33: #{tpu_custom_call.1} parent=5 // pred_check
        _
      $region34: #{tpu_custom_call.1} parent=5 // pred_check_branch
        %169 = sbr.rel (%p166) target = $region36
      $region35: #{tpu_custom_call.1} parent=5 // pred_region
        %s170 = ssub.s32 %s13, 1
        %p171 = scmp.lt.s32.totalorder %s18, 1
        %s172 = scalar_select %p171, %s18, 1
        %s173 = smul.addr %s172, 4
        %s174 = smul.addr %s173, 4
        %s175 = scalar_lea.vmem %s0, %s174
        %p176 = pneg %p39
        %p177 = pneg %p36
        %p178 = pneg %p60
        %p179 = pneg %p57
        %p180 = pneg %p81
        %p181 = pneg %p78
        %p182 = pneg %p102
        %p183 = pneg %p99
        %p184 = pneg %p128
        %p185 = pneg %p125
        %s186 = sand.u32 %s115, 1
        %s187 = scalar_lea.sflag [#allocation7], %s186
        %s188 = sand.u32 %s115, 1
        %s189 = smul.addr %s188, 24
        %s190 = scalar_lea.vmem [#allocation6], %s189
        %p191 = scmp.lt.s32.totalorder %s18, 1
        %s192 = scalar_select %p191, %s18, 1
        %s193 = smul.addr %s192, 4
        %s194 = smul.addr %s193, 4
        %s195 = scalar_lea.vmem %s0, %s194
        %v197 = vld [vmem:[%s195] sm:$0x77]
        %v198 = vld [vmem:[%s195 + $0x8] sm:$0x77]
        %v199 = vld [vmem:[%s1] sm:$0x7]
        %201 = vset.pattern.permute.xlu0 0
        %202 = vperm.xlu0 %201, %v199
        %v203 = vpop.permute.xlu0 %202
        %v205 = vunpack.c.l.s4 839922192
        %v206 = vunpack.c.0.s8 %v205
        %v207 = vperm.slane %v203, %v206
        %v209 = vmul.f32 %v197, %v207
        %v210 = vmul.f32 %v198, %v207
        %v211 = vld [vmem:[%s2] sm:$0x7]
        %213 = vset.pattern.permute.xlu0 0
        %214 = vperm.xlu0 %213, %v211
        %v215 = vpop.permute.xlu0 %214
        %v217 = vunpack.c.l.s4 839922192
        %v218 = vunpack.c.0.s8 %v217
        %v219 = vperm.slane %v215, %v218
        %v221 = vadd.f32 %v209, %v219
        %v222 = vadd.f32 %v210, %v219
        %vm223 = vcmp.gt.f32.partialorder %v221, 0.0
        %vm224 = vcmp.gt.f32.partialorder %v222, 0.0
        %v225 = vsel %vm223, 1, 0
        %v226 = vsel %vm224, 1, 0
        %v227 = vcvt.s32.f32 %v225
        %v228 = vcvt.s32.f32 %v226
        %vm229 = vcmp.lt.f32.partialorder %v221, 0.0
        %vm230 = vcmp.lt.f32.partialorder %v222, 0.0
        %v231 = vsel %vm229, 1, 0
        %v232 = vsel %vm230, 1, 0
        %v233 = vcvt.s32.f32 %v231
        %v234 = vcvt.s32.f32 %v232
        %v235 = vsub.f32 %v227, %v233
        %v236 = vsub.f32 %v228, %v234
        %239 = vst [vmem:[#allocation1] ss:$2 sm:$0xff] %v235
        %s240 = scalar_lea.vmem [#allocation1], 16
        %241 = vst [vmem:[%s240] ss:$2 sm:$0xff] %v236
        %v242 = vld.sshfl [vmem:[#allocation1] sm:$0xff pattern:$0x75316420]
        %v243 = vld.sshfl [vmem:[#allocation1 + $0x8] sm:$0xff pattern:$0x75316420]
        %v244 = vld.sshfl [vmem:[#allocation1 + $0x10] sm:$0xff pattern:$0x75316420]
        %v245 = vld.sshfl [vmem:[#allocation1 + $0x18] sm:$0xff pattern:$0x75316420]
        %v250 = vpack.c.bf16 %v243, %v242
        %v251 = vpack.c.bf16 %v245, %v244
        %v254 = vrot.slane %v250, 2
        %v255 = vrot.slane %v251, 4
        %v256 = vrot.slane %v251, 6
        %vm257 = vcmask 1041408
        %v260 = vsel %vm257, %v250, %v254
        %vm261 = vcmask 1045508
        %v264 = vsel %vm261, %v255, %v256
        %vm265 = vcmask 1043456
        %v266 = vsel %vm265, %v260, %v264
        %vm268 = vcmask 1041408
        %vm269 = vsmask.f32 1280
        %vm270 = vmand %vm268, %vm269
        %vm271 = vcmask 1043458
        %vm272 = vsmask.f32 3328
        %vm273 = vmand %vm271, %vm272
        %vm274 = vmor %vm273, %vm270
        %vm275 = vcmask 1045508
        %vm276 = vsmask.f32 5376
        %vm277 = vmand %vm275, %vm276
        %vm278 = vmor %vm277, %vm274
        %vm279 = vcmask 621574
        %vm280 = vsmask.f32 7424
        %vm281 = vmand %vm279, %vm280
        %vm282 = vmor %vm281, %vm278
        %v283 = vld [vmem:[#allocation2] sm:$0xff]
        %v284 = vsel %vm282, %v266, %v283
        %285 = vst [vmem:[#allocation2] sm:$0xff] %v284
        %vm286 = vcmask 1043459
        %vm287 = vsmask.f32 7950
        %vm288 = vmand %vm286, %vm287
        %vm289 = vcmask 1047559
        %vm290 = vsmask.f32 7966
        %vm291 = vmand %vm289, %vm290
        %vm292 = vmor %vm291, %vm288
        %v293 = vld [vmem:[#allocation3 + $0xc] sm:$0x88]
        %v294 = vsel %vm292, 0, %v293
        %295 = vst [vmem:[#allocation3 + $0xc] sm:$0x88] %v294
        %vm296 = vcmask 945155
        %vm297 = vmand %vm296, %vm287
        %v298 = vld [vmem:[#allocation3 + $0x14] sm:$0x8]
        %v299 = vsel %vm297, 0, %v298
        %300 = vst [vmem:[#allocation3 + $0x14] sm:$0x8] %v299
        %vm301 = vcmask 946048
        %302 = vst.msk [vmem:[#allocation3 + $0x8] sm:$0xf] %vm301, 0
        %303 = vst.msk [vmem:[#allocation3 + $0x14] sm:$0xf] %vm301, 0
        %v304 = vld [vmem:[#allocation2] sm:$0x3f]
        %306 = vst [vmem:[#allocation1] ss:$2 sm:$0xff] %v304
        %v307 = vld.sshfl [vmem:[#allocation1] sm:$0xff pattern:$0x75643120]
        %v308 = vld.sshfl [vmem:[#allocation1 + $0x8] sm:$0xff pattern:$0x75643120]
        %vm311 = vmor %vm277, %vm270
        %v312 = vld [vmem:[#allocation3] sm:$0x33]
        %v313 = vsel %vm311, %v307, %v312
        %314 = vst [vmem:[#allocation3] sm:$0x33] %v313
        %vm315 = vcmask 910336
        %vm316 = vmand %vm315, %vm269
        %v317 = vld [vmem:[#allocation3 + $0x8] sm:$0x3]
        %v318 = vsel %vm316, %v308, %v317
        %319 = vst [vmem:[#allocation3 + $0x8] sm:$0x3] %v318
        %v320 = vld [vmem:[#allocation2] sm:$0xff]
        %322 = vst [vmem:[#allocation1] ss:$2 sm:$0xff] %v320
        %v323 = vld.sshfl [vmem:[#allocation1] sm:$0xff pattern:$0x75643120]
        %v324 = vld.sshfl [vmem:[#allocation1 + $0x8] sm:$0xff pattern:$0x75643120]
        %v325 = vshrl.u32 %v323, 16
        %v327 = vrot.slane %v325, 6
        %v328 = vshll.u32 %v323, 16
        %v330 = vrot.slane %v328, 7
        %v331 = vor.u32 %v327, %v330
        %v332 = vshrl.u32 %v324, 16
        %v334 = vrot.slane %v332, 6
        %v335 = vshll.u32 %v324, 16
        %v337 = vrot.slane %v335, 7
        %v338 = vor.u32 %v334, %v337
        %339 = vrot.lane.b32.xlu0 %v331, 105
        %v340 = vpop.permute.xlu0 %339
        %341 = vrot.lane.b32.xlu0 %v338, 105
        %v342 = vpop.permute.xlu0 %341
        %v343 = vrot.slane %v340, 4
        %v344 = vrot.slane %v342, 4
        %vm345 = vcmask 1043456
        %v346 = vsel %vm345, %v343, %v344
        %vm347 = vcmask 859136
        %v348 = vsel %vm347, %v340, %v346
        %v349 = vsel %vm347, %v342, %v344
        %vm352 = vcmask 1042433
        %vm353 = vsmask.f32 7942
        %vm354 = vmand %vm352, %vm353
        %vm355 = vcmask 1046533
        %vm356 = vsmask.f32 7958
        %vm357 = vmand %vm355, %vm356
        %vm358 = vmor %vm357, %vm354
        %v359 = vld [vmem:[#allocation3] sm:$0x66]
        %v360 = vsel %vm358, %v348, %v359
        %361 = vst [vmem:[#allocation3] sm:$0x66] %v360
        %vm362 = vcmask 911361
        %vm363 = vmand %vm362, %vm353
        %v364 = vld [vmem:[#allocation3 + $0x8] sm:$0x6]
        %v365 = vsel %vm363, %v349, %v364
        %366 = vst [vmem:[#allocation3 + $0x8] sm:$0x6] %v365
        %v367 = vld [vmem:[#allocation2] sm:$0xff]
        %369 = vst [vmem:[#allocation1] ss:$2 sm:$0xff] %v367
        %v370 = vld.sshfl [vmem:[#allocation1] sm:$0xff pattern:$0x75643120]
        %v372 = vld.sshfl [vmem:[#allocation1 + $0x8] sm:$0xff pattern:$0x75643120]
        %v374 = vrot.slane %v370, 5
        %v375 = vrot.slane %v372, 5
        %v376 = vrot.slane %v374, 4
        %v377 = vrot.slane %v375, 4
        %378 = vrot.lane.b32.xlu0 %v374, 82
        %v379 = vpop.permute.xlu0 %378
        %380 = vrot.lane.b32.xlu0 %v375, 82
        %v381 = vpop.permute.xlu0 %380
        %382 = vrot.lane.b32.xlu0 %v376, 82
        %v383 = vpop.permute.xlu0 %382
        %384 = vrot.lane.b32.xlu0 %v377, 82
        %v385 = vpop.permute.xlu0 %384
        %v386 = vrot.slane %v379, 4
        %v387 = vrot.slane %v381, 4
        %v388 = vrot.slane %v383, 4
        %v389 = vrot.slane %v385, 4
        %v390 = vsel %vm345, %v386, %v387
        %vm391 = vcmask 670720
        %v392 = vsel %vm391, %v379, %v390
        %v393 = vsel %vm391, %v381, %v387
        %v394 = vsel %vm345, %v388, %v389
        %v395 = vsel %vm391, %v383, %v394
        %v396 = vsel %vm391, %v385, %v389
        %401 = vst [vmem:[#allocation3] sm:$0x88] %v392
        %vm402 = vcmask 912387
        %403 = vst.msk [vmem:[#allocation3 + $0x8] sm:$0x8] %vm402, %v393
        %vm404 = vcmask 1040384
        %vm405 = vsmask.f32 256
        %vm406 = vmand %vm404, %vm405
        %vm407 = vcmask 1044484
        %vm408 = vsmask.f32 4352
        %vm409 = vmand %vm407, %vm408
        %vm410 = vmor %vm409, %vm406
        %v411 = vld [vmem:[#allocation3 + $0xc] sm:$0x11]
        %v412 = vsel %vm410, %v395, %v411
        %413 = vst [vmem:[#allocation3 + $0xc] sm:$0x11] %v412
        %vm414 = vcmask 909312
        %vm415 = vmand %vm414, %vm405
        %v416 = vld [vmem:[#allocation3 + $0x14] sm:$0x1]
        %v417 = vsel %vm415, %v396, %v416
        %418 = vst [vmem:[#allocation3 + $0x14] sm:$0x1] %v417
        %v419 = vld [vmem:[#allocation2] sm:$0xff]
        %421 = vst [vmem:[#allocation1] ss:$2 sm:$0xff] %v419
        %v422 = vld.sshfl [vmem:[#allocation1] sm:$0xff pattern:$0x75643120]
        %v423 = vld.sshfl [vmem:[#allocation1 + $0x8] sm:$0xff pattern:$0x75643120]
        %v424 = vshrl.u32 %v422, 16
        %v426 = vrot.slane %v424, 7
        %v427 = vshll.u32 %v422, 16
        %v429 = vor.u32 %v426, %v427
        %v430 = vshrl.u32 %v423, 16
        %v432 = vrot.slane %v430, 7
        %v433 = vshll.u32 %v423, 16
        %v435 = vor.u32 %v432, %v433
        %436 = vrot.lane.b32.xlu0 %v429, 59
        %v437 = vpop.permute.xlu0 %436
        %438 = vrot.lane.b32.xlu0 %v435, 59
        %v439 = vpop.permute.xlu0 %438
        %v440 = vrot.slane %v437, 4
        %v441 = vrot.slane %v439, 4
        %v442 = vsel %vm345, %v440, %v441
        %vm443 = vcmask 482304
        %v444 = vsel %vm443, %v437, %v442
        %v445 = vsel %vm443, %v439, %v441
        %vm448 = vsmask.f32 7938
        %vm449 = vmand %vm268, %vm448
        %vm450 = vsmask.f32 7954
        %vm451 = vmand %vm275, %vm450
        %vm452 = vmor %vm451, %vm449
        %v453 = vld [vmem:[#allocation3 + $0xc] sm:$0x33]
        %v454 = vsel %vm452, %v444, %v453
        %455 = vst [vmem:[#allocation3 + $0xc] sm:$0x33] %v454
        %vm456 = vmand %vm315, %vm448
        %v457 = vld [vmem:[#allocation3 + $0x14] sm:$0x3]
        %v458 = vsel %vm456, %v445, %v457
        %459 = vst [vmem:[#allocation3 + $0x14] sm:$0x3] %v458
        %v460 = vld [vmem:[#allocation2] sm:$0xff]
        %s462 = scalar_lea.vmem [#allocation1], 1
        %463 = vst [vmem:[%s462] ss:$2 sm:$0xff] %v460
        %v464 = vld.sshfl [vmem:[#allocation1] sm:$0xff pattern:$0x75643120]
        %v466 = vld.sshfl [vmem:[#allocation1 + $0x8] sm:$0xff pattern:$0x75643120]
        %468 = vrot.lane.b32.xlu0 %v464, 36
        %v469 = vpop.permute.xlu0 %468
        %470 = vrot.lane.b32.xlu0 %v466, 36
        %v471 = vpop.permute.xlu0 %470
        %v472 = vrot.slane %v469, 4
        %v473 = vrot.slane %v471, 4
        %v474 = vsel %vm345, %v472, %v473
        %vm475 = vcmask 293888
        %v476 = vsel %vm475, %v469, %v474
        %v477 = vsel %vm475, %v471, %v473
        %vm480 = vcmask 1047558
        %vm481 = vmand %vm480, %vm280
        %vm482 = vmor %vm481, %vm273
        %v483 = vld [vmem:[#allocation3 + $0xc] sm:$0xcc]
        %v484 = vsel %vm482, %v476, %v483
        %485 = vst [vmem:[#allocation3 + $0xc] sm:$0xcc] %v484
        %vm486 = vcmask 912386
        %vm487 = vmand %vm486, %vm272
        %v488 = vld [vmem:[#allocation3 + $0x14] sm:$0xc]
        %v489 = vsel %vm487, %v477, %v488
        %490 = vst [vmem:[#allocation3 + $0x14] sm:$0xc] %v489
        %vm491 = vcmask 933760
        %492 = vst.msk [vmem:[#allocation4 + $0x10] sm:$0xff] %vm491, 0.0
        %v493 = vld [vmem:[#allocation3] sm:$0xff]
        %v494 = vld [vmem:[#allocation3 + $0x8] sm:$0xf]
        %v495 = vld [vmem:[#allocation3 + $0xc] sm:$0xff]
        %v496 = vld [vmem:[#allocation3 + $0x14] sm:$0xf]
        %v497 = vld [vmem:[%s3] sm:$0xf]
        %v498 = vld [vmem:[%s3 + $0x4] sm:$0xf]
        %v499 = vld [vmem:[%s3 + $0x8] sm:$0xf]
        %v500 = vld [vmem:[%s3 + $0xc] sm:$0xf]
        %v501 = vld [vmem:[%s3 + $0x10] sm:$0xf]
        %v507 = vunpack.c.l.b16 %v497
        %v508 = vunpack.c.l.b16 %v498
        %v509 = vunpack.c.l.b16 %v499
        %v510 = vunpack.c.l.b16 %v500
        %v511 = vunpack.c.l.b16 %v501
        %v512 = vpack.c.b16 %v508, %v507
        %v513 = vpack.c.b16 %v510, %v509
        %v514 = vpack.c.b16 %v511, %v511
        %v519 = vunpack.c.l.b16 %v493
        %v520 = vunpack.c.h.b16 %v493
        %v521 = vunpack.c.l.b16 %v494
        %v522 = vunpack.c.l.b16 %v495
        %v523 = vunpack.c.h.b16 %v495
        %v524 = vunpack.c.l.b16 %v496
        %v525 = vpack.c.b16 %v522, %v519
        %v526 = vpack.c.b16 %v523, %v520
        %v527 = vpack.c.b16 %v524, %v521
        %vm531 = vcmask 130048
        %v533 = vsel %vm531, %v512, 0
        %v536 = vsel %vm531, %v513, 0
        %v539 = vsel %vm531, %v514, 0
        %541 = vmatpush.bf16.msra.mxu0 0
        %542 = vmatpush.bf16.msra.mxu0 0
        %543 = vmatpush.bf16.msra.mxu0 0
        %544 = vmatpush.bf16.msra.mxu0 0
        %545 = vmatpush.bf16.msra.mxu0 0
        %546 = vmatpush.bf16.msra.mxu0 0
        %547 = vmatpush.bf16.msra.mxu0 0
        %548 = vmatpush.bf16.msra.mxu0 %v525
        %549 = vmatmul.bf16.gmra.mxu0 %v533
        %v550 = vpop.f32.mrf.mxu0
        %v551 = vadd.f32 0.0, %v550
        %v552 = vpop.f32.mrf.mxu0
        %v553 = vadd.f32 0.0, %v552
        %554 = vmatmul.bf16.gmra.mxu0 %v536
        %v555 = vpop.f32.mrf.mxu0
        %v556 = vadd.f32 0.0, %v555
        %v557 = vpop.f32.mrf.mxu0
        %v558 = vadd.f32 0.0, %v557
        %559 = vmatmul.bf16.gmra.mxu0 %v539
        %v560 = vpop.f32.mrf.mxu0
        %v561 = vadd.f32 0.0, %v560
        %v562 = vpop.f32.mrf.mxu0
        %563 = vdwg.mxu0
        %564 = vmatpush.bf16.msra.mxu0 0
        %565 = vmatpush.bf16.msra.mxu0 0
        %566 = vmatpush.bf16.msra.mxu0 0
        %567 = vmatpush.bf16.msra.mxu0 0
        %568 = vmatpush.bf16.msra.mxu0 0
        %569 = vmatpush.bf16.msra.mxu0 0
        %570 = vmatpush.bf16.msra.mxu0 0
        %571 = vmatpush.bf16.msra.mxu0 %v526
        %572 = vmatmul.bf16.gmra.mxu0 %v533
        %v573 = vpop.f32.mrf.mxu0
        %v574 = vadd.f32 0.0, %v573
        %v575 = vpop.f32.mrf.mxu0
        %v576 = vadd.f32 0.0, %v575
        %577 = vmatmul.bf16.gmra.mxu0 %v536
        %v578 = vpop.f32.mrf.mxu0
        %v579 = vadd.f32 0.0, %v578
        %v580 = vpop.f32.mrf.mxu0
        %v581 = vadd.f32 0.0, %v580
        %582 = vmatmul.bf16.gmra.mxu0 %v539
        %v583 = vpop.f32.mrf.mxu0
        %v584 = vadd.f32 0.0, %v583
        %v585 = vpop.f32.mrf.mxu0
        %586 = vdwg.mxu0
        %587 = vmatpush.bf16.msra.mxu0 0
        %588 = vmatpush.bf16.msra.mxu0 0
        %589 = vmatpush.bf16.msra.mxu0 0
        %590 = vmatpush.bf16.msra.mxu0 0
        %591 = vmatpush.bf16.msra.mxu0 0
        %592 = vmatpush.bf16.msra.mxu0 0
        %593 = vmatpush.bf16.msra.mxu0 0
        %594 = vmatpush.bf16.msra.mxu0 %v527
        %595 = vmatmul.bf16.gmra.mxu0 %v533
        %v596 = vpop.f32.mrf.mxu0
        %v597 = vadd.f32 0.0, %v596
        %v598 = vpop.f32.mrf.mxu0
        %v599 = vadd.f32 0.0, %v598
        %600 = vmatmul.bf16.gmra.mxu0 %v536
        %v601 = vpop.f32.mrf.mxu0
        %v602 = vadd.f32 0.0, %v601
        %v603 = vpop.f32.mrf.mxu0
        %v604 = vadd.f32 0.0, %v603
        %605 = vmatmul.bf16.gmra.mxu0 %v539
        %v606 = vpop.f32.mrf.mxu0
        %v607 = vadd.f32 0.0, %v606
        %v608 = vpop.f32.mrf.mxu0
        %609 = vdwg.mxu0
        %613 = vrot.lane.b32.xlu0 %v553, 127
        %v614 = vpop.permute.xlu0 %613
        %615 = vrot.lane.b32.xlu0 %v576, 127
        %v616 = vpop.permute.xlu0 %615
        %617 = vrot.lane.b32.xlu0 %v599, 127
        %v618 = vpop.permute.xlu0 %617
        %vm619 = vcmask 1039360
        %v620 = vsel %vm619, %v614, %v616
        %v621 = vsel %vm619, %v616, %v618
        %v625 = vadd.f32 %v551, %v620
        %v626 = vadd.f32 %v574, %v621
        %v627 = vadd.f32 %v597, %v618
        %631 = vrot.lane.b32.xlu0 %v556, 126
        %v632 = vpop.permute.xlu0 %631
        %633 = vrot.lane.b32.xlu0 %v579, 126
        %v634 = vpop.permute.xlu0 %633
        %635 = vrot.lane.b32.xlu0 %v602, 126
        %v636 = vpop.permute.xlu0 %635
        %vm637 = vcmask 1031168
        %v638 = vsel %vm637, %v632, %v634
        %v639 = vsel %vm637, %v634, %v636
        %v643 = vadd.f32 %v625, %v638
        %v644 = vadd.f32 %v626, %v639
        %v645 = vadd.f32 %v627, %v636
        %649 = vrot.lane.b32.xlu0 %v558, 125
        %v650 = vpop.permute.xlu0 %649
        %651 = vrot.lane.b32.xlu0 %v581, 125
        %v652 = vpop.permute.xlu0 %651
        %653 = vrot.lane.b32.xlu0 %v604, 125
        %v654 = vpop.permute.xlu0 %653
        %vm655 = vcmask 1022976
        %v656 = vsel %vm655, %v650, %v652
        %v657 = vsel %vm655, %v652, %v654
        %v661 = vadd.f32 %v643, %v656
        %v662 = vadd.f32 %v644, %v657
        %v663 = vadd.f32 %v645, %v654
        %667 = vrot.lane.b32.xlu0 %v561, 124
        %v668 = vpop.permute.xlu0 %667
        %669 = vrot.lane.b32.xlu0 %v584, 124
        %v670 = vpop.permute.xlu0 %669
        %671 = vrot.lane.b32.xlu0 %v607, 124
        %v672 = vpop.permute.xlu0 %671
        %vm673 = vcmask 1014784
        %v674 = vsel %vm673, %v668, %v670
        %v675 = vsel %vm673, %v670, %v672
        %v679 = vadd.f32 %v661, %v674
        %v680 = vadd.f32 %v662, %v675
        %v681 = vadd.f32 %v663, %v672
        %682 = vst [vmem:[#allocation4] sm:$0xff] %v679
        %683 = vst [vmem:[#allocation4 + $0x8] sm:$0xff] %v680
        %vm684 = vcmask 916480
        %685 = vst.msk [vmem:[#allocation4 + $0x10] sm:$0xff] %vm684, %v681
        %v686 = vld [vmem:[#allocation4] sm:$0xff]
        %v687 = vld [vmem:[#allocation4 + $0x8] sm:$0xff]
        %v688 = vld [vmem:[#allocation4 + $0x10] sm:$0xff]
        %692 = vrot.lane.b32.xlu0 %v686, 105
        %v693 = vpop.permute.xlu0 %692
        %694 = vrot.lane.b32.xlu0 %v687, 105
        %v695 = vpop.permute.xlu0 %694
        %696 = vrot.lane.b32.xlu0 %v688, 105
        %v697 = vpop.permute.xlu0 %696
        %vm698 = vcmask 859136
        %v699 = vsel %vm698, %v693, %v695
        %v700 = vsel %vm698, %v695, %v697
        %v704 = vmax.f32 %v686, %v699
        %v705 = vmax.f32 %v687, %v700
        %v706 = vmax.f32 %v688, %v697
        %707 = vrot.lane.b32.xlu0 %v686, 82
        %v708 = vpop.permute.xlu0 %707
        %709 = vrot.lane.b32.xlu0 %v687, 82
        %v710 = vpop.permute.xlu0 %709
        %711 = vrot.lane.b32.xlu0 %v688, 82
        %v712 = vpop.permute.xlu0 %711
        %vm713 = vcmask 670720
        %v714 = vsel %vm713, %v708, %v710
        %v715 = vsel %vm713, %v710, %v712
        %v719 = vmax.f32 %v704, %v714
        %v720 = vmax.f32 %v705, %v715
        %v721 = vmax.f32 %v706, %v712
        %722 = vst [vmem:[#allocation5] sm:$0xff] %v719
        %723 = vst [vmem:[#allocation5 + $0x8] sm:$0xff] %v720
        %vm724 = vcmask 556032
        %725 = vst.msk [vmem:[#allocation5 + $0x10] sm:$0xff] %vm724, %v721
        %v726 = vld [vmem:[#allocation5] sm:$0xff]
        %v727 = vld [vmem:[#allocation5 + $0x8] sm:$0xff]
        %v728 = vld [vmem:[#allocation5 + $0x10] sm:$0xff]
        %732 = vrot.lane.b32.xlu0 %v726, 127
        %v733 = vpop.permute.xlu0 %732
        %734 = vrot.lane.b32.xlu0 %v727, 127
        %v735 = vpop.permute.xlu0 %734
        %736 = vrot.lane.b32.xlu0 %v728, 127
        %v737 = vpop.permute.xlu0 %736
        %v738 = vsel %vm619, %v733, %v735
        %v739 = vsel %vm619, %v735, %v737
        %v743 = vmax.f32 %v726, %v738
        %v744 = vmax.f32 %v727, %v739
        %v745 = vmax.f32 %v728, %v737
        %746 = vrot.lane.b32.xlu0 %v726, 126
        %v747 = vpop.permute.xlu0 %746
        %748 = vrot.lane.b32.xlu0 %v727, 126
        %v749 = vpop.permute.xlu0 %748
        %750 = vrot.lane.b32.xlu0 %v728, 126
        %v751 = vpop.permute.xlu0 %750
        %v752 = vsel %vm637, %v747, %v749
        %v753 = vsel %vm637, %v749, %v751
        %v757 = vmax.f32 %v743, %v752
        %v758 = vmax.f32 %v744, %v753
        %v759 = vmax.f32 %v745, %v751
        %760 = vst [vmem:[%s190] sm:$0xff] %v757
        %761 = vst [vmem:[%s190 + $0x8] sm:$0xff] %v758
        %vm762 = vcmask 539648
        %763 = vst.msk [vmem:[%s190 + $0x10] sm:$0xff] %vm762, %v759
        %s764 = sand.u32 %s115, 1
        %s765 = scalar_lea.sflag [#allocation7], %s764
        %s766 = sand.u32 %s115, 1
        %s767 = smul.addr %s766, 24
        %s768 = scalar_lea.vmem [#allocation6], %s767
        // Predicated region
        $region37: #{tpu_custom_call.1} parent=35 // pred_check
          %p769 = pneg %p125
        $region38: #{tpu_custom_call.1} parent=35 // pred_check_branch
          %771 = sbr.rel (%p769) target = $region40
        $region39: #{tpu_custom_call.1} parent=35 // pred_region
          %773 = vsyncadd %s765, 0
          %s774 = smul.addr %s18, 3
          %s775 = smul.addr %s774, 8
          %s776 = scalar_lea.hbm %s4, %s775
          %s778 = sshll.u32 %s768, 4
          %s779 = int_to_ptr.vmem [resolvable:$true] %s778
          %s780 = sshll.u32 %s776, 4
          %s781 = int_to_ptr.hbm [resolvable:$true] %s780
          %783 = dma.vmem_to_hbm [thread:$0]  %s779, 384, %s781, %s765
        $region40: #{tpu_custom_call.1} parent=35 // pred_fallthru
          _
      $region36: #{tpu_custom_call.1} parent=5 // pred_fallthru
        _
      %p784 = scmp.le.s32.totalorder 2, %s13
      // Predicated region
      $region41: #{tpu_custom_call.1} parent=5 // pred_check
        %p785 = pneg %p784
      $region42: #{tpu_custom_call.1} parent=5 // pred_check_branch
        %787 = sbr.rel (%p785) target = $region44
      $region43: #{tpu_custom_call.1} parent=5 // pred_region
        %s788 = ssub.s32 %s13, 2
        // Predicated region
        $region45: #{tpu_custom_call.1} parent=43 // pred_check
          %p789 = pneg %p131
        $region46: #{tpu_custom_call.1} parent=43 // pred_check_branch
          %791 = sbr.rel (%p789) target = $region48
        $region47: #{tpu_custom_call.1} parent=43 // pred_region
          %s792 = sand.u32 %s116, 1
          %s793 = scalar_lea.sflag [#allocation7], %s792
          %s794 = sand.u32 %s116, 1
          %s795 = smul.addr %s794, 24
          %s796 = scalar_lea.vmem [#allocation6], %s795
          %798 = dma.done %s793, 384
        $region48: #{tpu_custom_call.1} parent=43 // pred_fallthru
          _
      $region44: #{tpu_custom_call.1} parent=5 // pred_fallthru
        _
    $region6: #{tpu_custom_call.1} parent=1 // loop_footer
      %s17 = sadd.s32 1, %s13
    $region7: #{tpu_custom_call.1} parent=1 // loop_footer_branch
      %12 = sbr.rel target = $region3
    $region8: #{tpu_custom_call.1} parent=1 // loop_exit
      _
    %799 = vsyncpa [#allocation7], 1
    %s800 = scalar_lea.sflag [#allocation7], 1
    %801 = vsyncpa %s800, 1

</llo_original>
